<compile_context>
chip_gen: v7x
topology: tpu7x:2x2x1
jax: 0.10.0
libtpu: 0.0.40
codegen_flags: <defaults>
</compile_context>

<pallas_src>
import jax
import jax.numpy as jnp
from jax.experimental import pallas as pl
from jax.experimental.pallas import tpu as pltpu


def _ce_kernel(logits_ref, target_ref, out_ref, m_sc, l_sc, sel_sc):
    ci = pl.program_id(1)

    # Init running max / sum / selected-logit accumulators on first class tile.
    @pl.when(ci == 0)
    def _():
        m_sc[...] = jnp.full(m_sc.shape, -jnp.inf, dtype=jnp.float32)
        l_sc[...] = jnp.zeros(l_sc.shape, dtype=jnp.float32)
        sel_sc[...] = jnp.zeros(sel_sc.shape, dtype=jnp.float32)

    x = logits_ref[...].astype(jnp.float32)          # (TILE_N, TILE_C)
    t = target_ref[...]                               # (TILE_N, 1) int32

    tile_c = x.shape[1]
    col0 = ci * tile_c
    col = col0 + jax.lax.broadcasted_iota(jnp.int32, x.shape, 1)

    # Online logsumexp update (running max m, running scaled sum l).
    m_prev = m_sc[...]
    m_new = jnp.maximum(m_prev, jnp.max(x, axis=1, keepdims=True))
    s = x - m_new                                     # single shared pass over tile
    alpha = jnp.exp(m_prev - m_new)
    l_sc[...] = alpha * l_sc[...] + jnp.sum(jnp.exp(s), axis=1, keepdims=True)
    m_sc[...] = m_new

    # Gather logits[i, target[i]] from the same shifted tile s (no dynamic
    # gather on TPU -> one-hot compare + lane reduce), re-adding m_new only
    # for rows whose target lies in this class tile.
    in_tile = (t >= col0) & (t < col0 + tile_c)       # (TILE_N, 1) bool
    s_at_t = jnp.sum(jnp.where(col == t, s, 0.0), axis=1, keepdims=True)
    sel_sc[...] = sel_sc[...] + jnp.where(in_tile, s_at_t + m_new, 0.0)

    # Finalize: loss = logsumexp - logit_at_target.
    @pl.when(ci == pl.num_programs(1) - 1)
    def _():
        loss = m_sc[...] + jnp.log(l_sc[...]) - sel_sc[...]
        out_ref[...] = loss.astype(out_ref.dtype)


def _round_up(x, m):
    return ((x + m - 1) // m) * m


def cross_entropy_loss(logits, target, *, max_tile_c=2048,
                       vmem_budget_bytes=8 * 1024 * 1024):
    """Per-element cross-entropy losses (no batch reduction).

    logits: (N, C) float array
    target: (N,)   integer class indices
    returns: (N,)  per-sample loss, same dtype as logits
    """
    N, C = logits.shape
    dtype = logits.dtype
    itemsize = jnp.dtype(dtype).itemsize

    target2d = target.astype(jnp.int32).reshape(N, 1)

    # ---- class tiling: single block for small vocab, streamed otherwise ----
    if C <= max_tile_c:
        tile_c = C
        c_pad = C
    else:
        tile_c = max_tile_c
        c_pad = _round_up(C, tile_c)
    if c_pad != C:
        # Pad with a huge negative value: exp() of it underflows to exactly 0
        # and the iota-vs-target compare can never select a padded column.
        logits = jnp.pad(logits, ((0, 0), (0, c_pad - C)),
                         constant_values=jnp.finfo(dtype).min)

    # ---- row tiling: biggest multiple of 8 whose double-buffered logits tile
    # fits the conservative VMEM budget (safe on all of v5e/v6e/v7x). ---------
    tile_n = vmem_budget_bytes // (2 * tile_c * itemsize)
    tile_n = max(8, min(1024, (tile_n // 8) * 8))
    tile_n = min(tile_n, _round_up(N, 8))

    n_row_tiles = pl.cdiv(N, tile_n)
    n_col_tiles = c_pad // tile_c

    cost = pl.CostEstimate(
        flops=5 * N * C,
        transcendentals=N * C,
        bytes_accessed=N * C * itemsize + N * 4 + N * itemsize,
    )

    out = pl.pallas_call(
        _ce_kernel,
        out_shape=jax.ShapeDtypeStruct((N, 1), dtype),
        grid_spec=pltpu.PrefetchScalarGridSpec(
            num_scalar_prefetch=0,
            grid=(n_row_tiles, n_col_tiles),
            in_specs=[
                pl.BlockSpec((tile_n, tile_c), lambda i, j: (i, j)),
                pl.BlockSpec((tile_n, 1), lambda i, j: (i, 0)),
            ],
            out_specs=pl.BlockSpec((tile_n, 1), lambda i, j: (i, 0)),
            scratch_shapes=[pltpu.VMEM((tile_n, 1), jnp.float32)] * 3,
        ),
        compiler_params=pltpu.CompilerParams(
            dimension_semantics=("parallel", "arbitrary"),
        ),
        cost_estimate=cost,
    )(logits, target2d)

    return out.reshape(N)


if __name__ == "__main__":
    key = jax.random.PRNGKey(0)
    k_logits, k_target = jax.random.split(key)

    N, C = 8, 32  # small shapes: batch=8, classes=32
    logits = jax.random.normal(k_logits, (N, C), dtype=jnp.float32)
    target = jax.random.randint(k_target, (N,), 0, C, dtype=jnp.int32)

    loss = cross_entropy_loss(logits, target)
    jax.block_until_ready(loss)

    # reference check (plain JAX) — mirrors: -log_softmax(logits)[i, target[i]]
    ref = -jax.nn.log_softmax(logits, axis=1)[jnp.arange(N), target]
    assert jnp.allclose(loss, ref, atol=1e-5, rtol=1e-5), (loss, ref)

    print("KERNEL_OK")
</pallas_src>

<mosaic_0001>
module attributes {stable_mosaic.version = 11 : i64} {
  func.func @_ce_kernel(%arg0: i32, %arg1: i32, %arg2: memref<8x32xf32, #tpu.memory_space<vmem>>, %arg3: memref<8x1xi32, #tpu.memory_space<vmem>>, %arg4: memref<8x1xf32, #tpu.memory_space<vmem>>, %arg5: memref<8x1xf32, #tpu.memory_space<vmem>>, %arg6: memref<8x1xf32, #tpu.memory_space<vmem>>, %arg7: memref<8x1xf32, #tpu.memory_space<vmem>>) attributes {dimension_semantics = [#tpu.dimension_semantics<parallel>, #tpu.dimension_semantics<arbitrary>], iteration_bounds = array<i64: 1, 1>, scalar_prefetch = 0 : i64, scratch_operands = 3 : i64, tpu.core_type = #tpu.core_type<tc>, window_params = [{transform_indices = @transform_0, window_bounds = array<i64: 8, 32>}, {transform_indices = @transform_1, window_bounds = array<i64: 8, 1>}, {transform_indices = @transform_2, window_bounds = array<i64: 8, 1>}]} {
    %c0_i32 = arith.constant 0 : i32
    %0 = arith.cmpi eq, %arg1, %c0_i32 : i32
    %1 = arith.extui %0 : i1 to i32
    %c0_i32_0 = arith.constant 0 : i32
    %2 = arith.cmpi ne, %1, %c0_i32_0 : i32
    scf.if %2 {
      %cst_23 = arith.constant 0xFF800000 : f32
      %46 = vector.broadcast %cst_23 : f32 to vector<8x1xf32>
      %c0_24 = arith.constant 0 : index
      %c0_25 = arith.constant 0 : index
      %47 = vector.load %arg5[%c0_24, %c0_25] : memref<8x1xf32, #tpu.memory_space<vmem>>, vector<8x1xf32>
      tpu.vector_store %arg5[%c0_24, %c0_25], %46 {strides = array<i32>} : memref<8x1xf32, #tpu.memory_space<vmem>>, vector<8x1xf32>,
      %cst_26 = arith.constant 0.000000e+00 : f32
      %48 = vector.broadcast %cst_26 : f32 to vector<8x1xf32>
      %c0_27 = arith.constant 0 : index
      %c0_28 = arith.constant 0 : index
      %49 = vector.load %arg6[%c0_27, %c0_28] : memref<8x1xf32, #tpu.memory_space<vmem>>, vector<8x1xf32>
      tpu.vector_store %arg6[%c0_27, %c0_28], %48 {strides = array<i32>} : memref<8x1xf32, #tpu.memory_space<vmem>>, vector<8x1xf32>,
      %cst_29 = arith.constant 0.000000e+00 : f32
      %50 = vector.broadcast %cst_29 : f32 to vector<8x1xf32>
      %c0_30 = arith.constant 0 : index
      %c0_31 = arith.constant 0 : index
      %51 = vector.load %arg7[%c0_30, %c0_31] : memref<8x1xf32, #tpu.memory_space<vmem>>, vector<8x1xf32>
      tpu.vector_store %arg7[%c0_30, %c0_31], %50 {strides = array<i32>} : memref<8x1xf32, #tpu.memory_space<vmem>>, vector<8x1xf32>,
    } else {
    }
    %c0 = arith.constant 0 : index
    %c0_1 = arith.constant 0 : index
    %3 = vector.load %arg2[%c0, %c0_1] : memref<8x32xf32, #tpu.memory_space<vmem>>, vector<8x32xf32>
    %c0_2 = arith.constant 0 : index
    %c0_3 = arith.constant 0 : index
    %4 = vector.load %arg3[%c0_2, %c0_3] : memref<8x1xi32, #tpu.memory_space<vmem>>, vector<8x1xi32>
    %c32_i32 = arith.constant 32 : i32
    %5 = arith.muli %arg1, %c32_i32 : i32
    %6 = tpu.iota {dimensions = array<i32: 1>} : vector<8x32xi32>
    %7 = vector.broadcast %5 : i32 to vector<8x32xi32>
    %8 = arith.addi %7, %6 : vector<8x32xi32>
    %c0_4 = arith.constant 0 : index
    %c0_5 = arith.constant 0 : index
    %9 = vector.load %arg5[%c0_4, %c0_5] : memref<8x1xf32, #tpu.memory_space<vmem>>, vector<8x1xf32>
    %cst = arith.constant dense<0xFF800000> : vector<8xf32>
    %10 = vector.multi_reduction <maximumf>, %3, %cst [1] : vector<8x32xf32> to vector<8xf32>
    %11 = vector.shape_cast %10 : vector<8xf32> to vector<8x1xf32>
    %12 = arith.maximumf %9, %11 : vector<8x1xf32>
    %13 = vector.broadcast %12 : vector<8x1xf32> to vector<8x32xf32>
    %14 = arith.subf %3, %13 : vector<8x32xf32>
    %15 = arith.subf %9, %12 : vector<8x1xf32>
    %16 = math.exp %15 : vector<8x1xf32>
    %c0_6 = arith.constant 0 : index
    %c0_7 = arith.constant 0 : index
    %17 = vector.load %arg6[%c0_6, %c0_7] : memref<8x1xf32, #tpu.memory_space<vmem>>, vector<8x1xf32>
    %18 = arith.mulf %16, %17 : vector<8x1xf32>
    %19 = math.exp %14 : vector<8x32xf32>
    %cst_8 = arith.constant dense<0.000000e+00> : vector<8xf32>
    %20 = vector.multi_reduction <add>, %19, %cst_8 [1] : vector<8x32xf32> to vector<8xf32>
    %21 = vector.shape_cast %20 : vector<8xf32> to vector<8x1xf32>
    %22 = arith.addf %18, %21 : vector<8x1xf32>
    %c0_9 = arith.constant 0 : index
    %c0_10 = arith.constant 0 : index
    %23 = vector.load %arg6[%c0_9, %c0_10] : memref<8x1xf32, #tpu.memory_space<vmem>>, vector<8x1xf32>
    tpu.vector_store %arg6[%c0_9, %c0_10], %22 {strides = array<i32>} : memref<8x1xf32, #tpu.memory_space<vmem>>, vector<8x1xf32>,
    %c0_11 = arith.constant 0 : index
    %c0_12 = arith.constant 0 : index
    %24 = vector.load %arg5[%c0_11, %c0_12] : memref<8x1xf32, #tpu.memory_space<vmem>>, vector<8x1xf32>
    tpu.vector_store %arg5[%c0_11, %c0_12], %12 {strides = array<i32>} : memref<8x1xf32, #tpu.memory_space<vmem>>, vector<8x1xf32>,
    %25 = vector.broadcast %5 : i32 to vector<8x1xi32>
    %26 = arith.cmpi sge, %4, %25 : vector<8x1xi32>
    %c32_i32_13 = arith.constant 32 : i32
    %27 = arith.addi %5, %c32_i32_13 : i32
    %28 = vector.broadcast %27 : i32 to vector<8x1xi32>
    %29 = arith.cmpi slt, %4, %28 : vector<8x1xi32>
    %30 = arith.andi %26, %29 : vector<8x1xi1>
    %31 = vector.broadcast %4 : vector<8x1xi32> to vector<8x32xi32>
    %32 = arith.cmpi eq, %8, %31 : vector<8x32xi32>
    %cst_14 = arith.constant 0.000000e+00 : f32
    %33 = vector.broadcast %cst_14 : f32 to vector<8x32xf32>
    %34 = arith.select %32, %14, %33 : vector<8x32xi1>, vector<8x32xf32>
    %cst_15 = arith.constant dense<0.000000e+00> : vector<8xf32>
    %35 = vector.multi_reduction <add>, %34, %cst_15 [1] : vector<8x32xf32> to vector<8xf32>
    %36 = vector.shape_cast %35 : vector<8xf32> to vector<8x1xf32>
    %c0_16 = arith.constant 0 : index
    %c0_17 = arith.constant 0 : index
    %37 = vector.load %arg7[%c0_16, %c0_17] : memref<8x1xf32, #tpu.memory_space<vmem>>, vector<8x1xf32>
    %38 = arith.addf %36, %12 : vector<8x1xf32>
    %cst_18 = arith.constant 0.000000e+00 : f32
    %39 = vector.broadcast %cst_18 : f32 to vector<8x1xf32>
    %40 = arith.select %30, %38, %39 : vector<8x1xi1>, vector<8x1xf32>
    %41 = arith.addf %37, %40 : vector<8x1xf32>
    %c0_19 = arith.constant 0 : index
    %c0_20 = arith.constant 0 : index
    %42 = vector.load %arg7[%c0_19, %c0_20] : memref<8x1xf32, #tpu.memory_space<vmem>>, vector<8x1xf32>
    tpu.vector_store %arg7[%c0_19, %c0_20], %41 {strides = array<i32>} : memref<8x1xf32, #tpu.memory_space<vmem>>, vector<8x1xf32>,
    %c0_i32_21 = arith.constant 0 : i32
    %43 = arith.cmpi eq, %arg1, %c0_i32_21 : i32
    %44 = arith.extui %43 : i1 to i32
    %c0_i32_22 = arith.constant 0 : i32
    %45 = arith.cmpi ne, %44, %c0_i32_22 : i32
    scf.if %45 {
      %c0_23 = arith.constant 0 : index
      %c0_24 = arith.constant 0 : index
      %46 = vector.load %arg5[%c0_23, %c0_24] : memref<8x1xf32, #tpu.memory_space<vmem>>, vector<8x1xf32>
      %c0_25 = arith.constant 0 : index
      %c0_26 = arith.constant 0 : index
      %47 = vector.load %arg6[%c0_25, %c0_26] : memref<8x1xf32, #tpu.memory_space<vmem>>, vector<8x1xf32>
      %48 = math.log %47 : vector<8x1xf32>
      %49 = arith.addf %46, %48 : vector<8x1xf32>
      %c0_27 = arith.constant 0 : index
      %c0_28 = arith.constant 0 : index
      %50 = vector.load %arg7[%c0_27, %c0_28] : memref<8x1xf32, #tpu.memory_space<vmem>>, vector<8x1xf32>
      %51 = arith.subf %49, %50 : vector<8x1xf32>
      %c0_29 = arith.constant 0 : index
      %c0_30 = arith.constant 0 : index
      %52 = vector.load %arg4[%c0_29, %c0_30] : memref<8x1xf32, #tpu.memory_space<vmem>>, vector<8x1xf32>
      tpu.vector_store %arg4[%c0_29, %c0_30], %51 {strides = array<i32>} : memref<8x1xf32, #tpu.memory_space<vmem>>, vector<8x1xf32>,
    } else {
    }
    return
  }
  func.func @transform_0(%arg0: i32, %arg1: i32) -> (i32, i32) {
    %c0_i32 = arith.constant 0 : i32
    return %arg0, %arg1 : i32, i32
  }
  func.func @transform_1(%arg0: i32, %arg1: i32) -> (i32, i32) {
    %c0_i32 = arith.constant 0 : i32
    %c0_i32_0 = arith.constant 0 : i32
    return %arg0, %c0_i32 : i32, i32
  }
  func.func @transform_2(%arg0: i32, %arg1: i32) -> (i32, i32) {
    %c0_i32 = arith.constant 0 : i32
    %c0_i32_0 = arith.constant 0 : i32
    return %arg0, %c0_i32 : i32, i32
  }
}

</mosaic_0001>

<llo_original>
// kernel: tpu_custom_call.1
$region0: #{tpu_custom_call.1}
  #allocation0 [shape = 'u32[]', space=smem, size = 0x4, offset = 0x4, fixed_abs, tag = 'smem constant byte address 0x4 - core index']
  #allocation1 [shape = 'u32[144,128]{1,0:T(1,128)}', space=vmem, size = 0x12000, scoped, tag = 'internal scratch']
  #allocation2 [shape = 'f32[8,1]{1,0:T(8,128)}', space=vmem, size = 0x1000, scoped, tag = 'scratch operand']
  #allocation3 [shape = 'f32[8,1]{1,0:T(8,128)}', space=vmem, size = 0x1000, scoped, tag = 'scratch operand']
  #allocation4 [shape = 'f32[8,1]{1,0:T(8,128)}', space=vmem, size = 0x1000, scoped, tag = 'scratch operand']
  %s0 = inlined_call_operand.vmem [shape: f32[8,32], index: 0, kind: input, shape index: {}]
  %s1 = inlined_call_operand.vmem [shape: s32[8,1], index: 1, kind: input, shape index: {}]
  %s2 = inlined_call_operand.vmem [shape: f32[8,1], index: 2, kind: output, shape index: {}]
  %s3 = sld [smem:[#allocation0]]
  $region26: #{tpu_custom_call.1} parent=0
    _
  %s5 = ssub.s32 1, %s3
  %s6 = scalar_select 0, %s5, %s3
  // Predicated region
  $region2: #{tpu_custom_call.1} parent=0 // pred_check
    _
  $region3: #{tpu_custom_call.1} parent=0 // pred_check_branch
    %8 = sbr.rel (0) target = $region5
  $region4: #{tpu_custom_call.1} parent=0 // pred_region
    _
  $region5: #{tpu_custom_call.1} parent=0 // pred_fallthru
    _
  // Predicated region
  $region6: #{tpu_custom_call.1} parent=0 // pred_check
    _
  $region7: #{tpu_custom_call.1} parent=0 // pred_check_branch
    %10 = sbr.rel (0) target = $region9
  $region8: #{tpu_custom_call.1} parent=0 // pred_region
    _
  $region9: #{tpu_custom_call.1} parent=0 // pred_fallthru
    _
  %p11 = scmp.eq.s32.totalorder 0, 0
  // Predicated region
  $region10: #{tpu_custom_call.1} parent=0 // pred_check
    %p12 = pneg %p11
  $region11: #{tpu_custom_call.1} parent=0 // pred_check_branch
    %14 = sbr.rel (%p12) target = $region13
  $region12: #{tpu_custom_call.1} parent=0 // pred_region
    %vm15 = vcmask 7168
    %16 = vst.msk [vmem:[#allocation2] sm:$0xff] %vm15, -inf
    %17 = vst.msk [vmem:[#allocation3] sm:$0xff] %vm15, 0.0
    %18 = vst.msk [vmem:[#allocation4] sm:$0xff] %vm15, 0.0
  $region13: #{tpu_custom_call.1} parent=0 // pred_fallthru
    _
  %v19 = vld [vmem:[%s0] sm:$0xff]
  %v20 = vld [vmem:[%s1] sm:$0xff]
  %s21 = smul.u32 0, 32
  %v22 = vlaneseq
  %v23 = vand.u32 %v22, 127
  %v24 = vstv %s21
  %v25 = vadd.s32 %v24, %v23
  %v26 = vld [vmem:[#allocation2] sm:$0xff]
  %vm27 = vcmask 261120
  %v28 = vsel %vm27, %v19, -inf
  %29 = vmax.xlane.f32.xlu0 %v28
  %v30 = vpop.xlane.xlu0 %29
  %v31 = vmax.f32 %v26, %v30
  %33 = vset.pattern.permute.xlu0 0
  %34 = vperm.xlu0 %33, %v31
  %v35 = vpop.permute.xlu0 %34
  %v37 = vsub.f32 %v19, %v35
  %v38 = vsub.f32 %v26, %v31
  %v39 = vmul.f32 %v38, 1.442695
  %v40 = vpow.pop %v39
  %v41 = vld [vmem:[#allocation3] sm:$0xff]
  %v42 = vmul.f32 %v40, %v41
  %v43 = vmul.f32 %v37, 1.442695
  %v44 = vpow.pop %v43
  %v45 = vsel %vm27, %v44, 0.0
  %46 = vadd.xlane.f32.xlu0 %v45
  %v47 = vpop.xlane.xlu0 %46
  %v48 = vadd.f32 %v42, %v47
  %vm49 = vcmask 7168
  %50 = vst.msk [vmem:[#allocation3] sm:$0xff] %vm49, %v48
  %51 = vst.msk [vmem:[#allocation2] sm:$0xff] %vm49, %v31
  %vm52 = vcmp.ge.s32.totalorder %v20, %v24
  %s53 = sadd.s32 %s21, 32
  %v54 = vstv %s53
  %vm55 = vcmp.lt.s32.totalorder %v20, %v54
  %vm56 = vmand %vm52, %vm55
  %57 = vset.pattern.permute.xlu0 0
  %58 = vperm.xlu0 %57, %v20
  %v59 = vpop.permute.xlu0 %58
  %vm60 = vcmp.eq.s32.totalorder %v25, %v59
  %v61 = vsel %vm60, %v37, 0.0
  %v62 = vsel %vm27, %v61, 0.0
  %63 = vadd.xlane.f32.xlu0 %v62
  %v64 = vpop.xlane.xlu0 %63
  %v65 = vld [vmem:[#allocation4] sm:$0xff]
  %v66 = vadd.f32 %v64, %v31
  %v67 = vsel %vm56, %v66, 0.0
  %v68 = vadd.f32 %v65, %v67
  %69 = vst.msk [vmem:[#allocation4] sm:$0xff] %vm49, %v68
  // Predicated region
  $region14: #{tpu_custom_call.1} parent=0 // pred_check
    %p70 = pneg %p11
  $region15: #{tpu_custom_call.1} parent=0 // pred_check_branch
    %72 = sbr.rel (%p70) target = $region17
  $region16: #{tpu_custom_call.1} parent=0 // pred_region
    %v73 = vld [vmem:[#allocation2] sm:$0xff]
    %v74 = vld [vmem:[#allocation3] sm:$0xff]
    %v75 = vlog2.pop %v74
    %v76 = vmul.f32 %v75, 0.6931472
    %v77 = vadd.f32 %v73, %v76
    %v78 = vld [vmem:[#allocation4] sm:$0xff]
    %v79 = vsub.f32 %v77, %v78
    %80 = vst.msk [vmem:[%s2] sm:$0xff] %vm49, %v79
  $region17: #{tpu_custom_call.1} parent=0 // pred_fallthru
    _
  // Predicated region
  $region18: #{tpu_custom_call.1} parent=0 // pred_check
    _
  $region19: #{tpu_custom_call.1} parent=0 // pred_check_branch
    %82 = sbr.rel (0) target = $region21
  $region20: #{tpu_custom_call.1} parent=0 // pred_region
    _
  $region21: #{tpu_custom_call.1} parent=0 // pred_fallthru
    _
  // Predicated region
  $region22: #{tpu_custom_call.1} parent=0 // pred_check
    _
  $region23: #{tpu_custom_call.1} parent=0 // pred_check_branch
    %84 = sbr.rel (0) target = $region25
  $region24: #{tpu_custom_call.1} parent=0 // pred_region
    _
  $region25: #{tpu_custom_call.1} parent=0 // pred_fallthru
    _

</llo_original>
